<compile_context>
chip_gen: v6e
topology: v6e:2x2x1
jax: 0.10.0
libtpu: 0.0.40
codegen_flags: <defaults>
</compile_context>

<pallas_src>
import jax
import jax.numpy as jnp
from jax.experimental import pallas as pl
from jax.experimental.pallas import tpu as pltpu

LANE = 128  # lane width; final fc output is padded to this for lane-dense stores


def _stn2d_kernel(x_ref,
                  w1_ref, b1_ref, w2_ref, b2_ref, w3_ref, b3_ref,
                  w4_ref, b4_ref, w5_ref, b5_ref, w6_ref, b6_ref,
                  o_ref):
    # x_ref: (1, P, 2) -- one batch element per grid step; points on sublanes.
    x = x_ref[0]                                                       # [P, 2]

    # Per-point shared MLP (the 1x1 convs), f32 accumulation on the MXU.
    h = jnp.dot(x, w1_ref[...], preferred_element_type=jnp.float32)
    h = jnp.maximum(h + b1_ref[...], 0.0)                              # [P, 32]
    h = jnp.dot(h, w2_ref[...], preferred_element_type=jnp.float32)
    h = jnp.maximum(h + b2_ref[...], 0.0)                              # [P, 64]
    h = jnp.dot(h, w3_ref[...], preferred_element_type=jnp.float32)
    h = jnp.maximum(h + b3_ref[...], 0.0)                              # [P, 128]

    # Global max-pool over the points (torch.max(x, 2)).
    g = jnp.max(h, axis=0, keepdims=True)                              # [1, 128]

    # FC head.
    g = jnp.dot(g, w4_ref[...], preferred_element_type=jnp.float32)
    g = jnp.maximum(g + b4_ref[...], 0.0)                              # [1, 64]
    g = jnp.dot(g, w5_ref[...], preferred_element_type=jnp.float32)
    g = jnp.maximum(g + b5_ref[...], 0.0)                              # [1, 32]
    g = jnp.dot(g, w6_ref[...], preferred_element_type=jnp.float32)
    g = g + b6_ref[...]                                                # [1, 128] (cols >= 4 are zero)

    # + identity [1, 0, 0, 1] on the first 4 lanes (padded lanes stay zero).
    col = jax.lax.broadcasted_iota(jnp.int32, g.shape, 1)
    iden = jnp.where((col == 0) | (col == 3), 1.0, 0.0)
    o_ref[0] = (g + iden).astype(o_ref.dtype)


def stn2d_forward(x, params):
    """STN2d forward. x: [B, 2, P] (PyTorch Conv1d layout). Returns [B, 2, 2].

    params = (w1, b1, ..., w6, b6) with weights stored transposed vs PyTorch,
    i.e. wK has shape [in_features, out_features].
    """
    w1, b1, w2, b2, w3, b3, w4, b4, w5, b5, w6, b6 = params
    B, c_in, P = x.shape
    assert c_in == 2

    # Points -> matmul M (sublane) dim, channels -> lanes.
    x_t = jnp.transpose(x, (0, 2, 1))                                  # [B, P, 2]

    # Lane-dense final layer: pad fc3 (32 -> 4) out to 128 lanes with zeros.
    w6p = jnp.pad(w6, ((0, 0), (0, LANE - w6.shape[1])))               # [32, 128]
    b6p = jnp.pad(b6, ((0, LANE - b6.shape[0]),))                      # [128]

    weights = [w1, w2, w3, w4, w5, w6p]
    biases2d = [b.reshape(1, -1) for b in (b1, b2, b3, b4, b5, b6p)]

    def full_spec(shape):
        # Constant block index -> operand stays resident in VMEM across the grid.
        return pl.BlockSpec(shape, lambda b: (0, 0))

    in_specs = [pl.BlockSpec((1, P, c_in), lambda b: (b, 0, 0))]
    operands = [x_t]
    for w, bb in zip(weights, biases2d):
        in_specs.append(full_spec(w.shape))
        operands.append(w)
        in_specs.append(full_spec(bb.shape))
        operands.append(bb)

    out = pl.pallas_call(
        _stn2d_kernel,
        out_shape=jax.ShapeDtypeStruct((B, 1, LANE), jnp.float32),
        grid_spec=pltpu.PrefetchScalarGridSpec(
            num_scalar_prefetch=0,
            grid=(B,),
            in_specs=in_specs,
            out_specs=pl.BlockSpec((1, 1, LANE), lambda b: (b, 0, 0)),
        ),
        compiler_params=pltpu.CompilerParams(
            dimension_semantics=("parallel",),
        ),
    )(*operands)

    return out[:, 0, :4].reshape(B, 2, 2)


def stn2d_ref(x, params):
    """Pure-JAX reference matching the PyTorch forward."""
    w1, b1, w2, b2, w3, b3, w4, b4, w5, b5, w6, b6 = params
    B = x.shape[0]
    h = jnp.transpose(x, (0, 2, 1))                                    # [B, P, 2]
    h = jax.nn.relu(h @ w1 + b1)
    h = jax.nn.relu(h @ w2 + b2)
    h = jax.nn.relu(h @ w3 + b3)
    g = jnp.max(h, axis=1)                                             # [B, 128]
    g = jax.nn.relu(g @ w4 + b4)
    g = jax.nn.relu(g @ w5 + b5)
    g = g @ w6 + b6                                                    # [B, 4]
    g = g + jnp.array([1.0, 0.0, 0.0, 1.0], dtype=g.dtype)
    return g.reshape(B, 2, 2)


if __name__ == "__main__":
    B, P = 2, 30  # STN2d default num_points=30; small batch

    dims = [(2, 32), (32, 64), (64, 128), (128, 64), (64, 32), (32, 4)]
    keys = jax.random.split(jax.random.PRNGKey(0), 2 * len(dims) + 1)
    kx, pkeys = keys[0], keys[1:]

    # Deterministic init mimicking nn.Linear / nn.Conv1d defaults
    # (uniform in +/- 1/sqrt(fan_in)); weights stored as [in, out].
    params = []
    for idx, (fin, fout) in enumerate(dims):
        kw, kb = pkeys[2 * idx], pkeys[2 * idx + 1]
        bound = 1.0 / (fin ** 0.5)
        w = jax.random.uniform(kw, (fin, fout), jnp.float32, minval=-bound, maxval=bound)
        b = jax.random.uniform(kb, (fout,), jnp.float32, minval=-bound, maxval=bound)
        params += [w, b]
    params = tuple(params)

    x = jax.random.normal(kx, (B, 2, P), jnp.float32)

    out = stn2d_forward(x, params)
    out = jax.block_until_ready(out)

    ref = stn2d_ref(x, params)
    assert out.shape == (B, 2, 2)
    assert jnp.allclose(out, ref, atol=1e-4, rtol=1e-4), "mismatch vs reference"

    print("KERNEL_OK")
</pallas_src>

<mosaic_0001>
module attributes {stable_mosaic.version = 11 : i64} {
  func.func @_stn2d_kernel(%arg0: i32, %arg1: memref<1x30x2xf32, #tpu.memory_space<vmem>>, %arg2: memref<2x32xf32, #tpu.memory_space<vmem>>, %arg3: memref<1x32xf32, #tpu.memory_space<vmem>>, %arg4: memref<32x64xf32, #tpu.memory_space<vmem>>, %arg5: memref<1x64xf32, #tpu.memory_space<vmem>>, %arg6: memref<64x128xf32, #tpu.memory_space<vmem>>, %arg7: memref<1x128xf32, #tpu.memory_space<vmem>>, %arg8: memref<128x64xf32, #tpu.memory_space<vmem>>, %arg9: memref<1x64xf32, #tpu.memory_space<vmem>>, %arg10: memref<64x32xf32, #tpu.memory_space<vmem>>, %arg11: memref<1x32xf32, #tpu.memory_space<vmem>>, %arg12: memref<32x128xf32, #tpu.memory_space<vmem>>, %arg13: memref<1x128xf32, #tpu.memory_space<vmem>>, %arg14: memref<1x1x128xf32, #tpu.memory_space<vmem>>) attributes {dimension_semantics = [#tpu.dimension_semantics<parallel>], iteration_bounds = array<i64: 2>, scalar_prefetch = 0 : i64, scratch_operands = 0 : i64, tpu.core_type = #tpu.core_type<tc>, window_params = [{transform_indices = @transform_0, window_bounds = array<i64: 1, 30, 2>}, {pipeline_mode = #tpu.pipeline_mode<synchronous>, transform_indices = @transform_1, window_bounds = array<i64: 2, 32>}, {pipeline_mode = #tpu.pipeline_mode<synchronous>, transform_indices = @transform_2, window_bounds = array<i64: 1, 32>}, {pipeline_mode = #tpu.pipeline_mode<synchronous>, transform_indices = @transform_3, window_bounds = array<i64: 32, 64>}, {pipeline_mode = #tpu.pipeline_mode<synchronous>, transform_indices = @transform_4, window_bounds = array<i64: 1, 64>}, {pipeline_mode = #tpu.pipeline_mode<synchronous>, transform_indices = @transform_5, window_bounds = array<i64: 64, 128>}, {pipeline_mode = #tpu.pipeline_mode<synchronous>, transform_indices = @transform_6, window_bounds = array<i64: 1, 128>}, {pipeline_mode = #tpu.pipeline_mode<synchronous>, transform_indices = @transform_7, window_bounds = array<i64: 128, 64>}, {pipeline_mode = #tpu.pipeline_mode<synchronous>, transform_indices = @transform_8, window_bounds = array<i64: 1, 64>}, {pipeline_mode = #tpu.pipeline_mode<synchronous>, transform_indices = @transform_9, window_bounds = array<i64: 64, 32>}, {pipeline_mode = #tpu.pipeline_mode<synchronous>, transform_indices = @transform_10, window_bounds = array<i64: 1, 32>}, {pipeline_mode = #tpu.pipeline_mode<synchronous>, transform_indices = @transform_11, window_bounds = array<i64: 32, 128>}, {pipeline_mode = #tpu.pipeline_mode<synchronous>, transform_indices = @transform_12, window_bounds = array<i64: 1, 128>}, {transform_indices = @transform_13, window_bounds = array<i64: 1, 1, 128>}]} {
    %c0 = arith.constant 0 : index
    %c0_0 = arith.constant 0 : index
    %c0_1 = arith.constant 0 : index
    %0 = vector.load %arg1[%c0, %c0_0, %c0_1] : memref<1x30x2xf32, #tpu.memory_space<vmem>>, vector<1x30x2xf32>
    %1 = vector.shape_cast %0 : vector<1x30x2xf32> to vector<30x2xf32>
    %c0_2 = arith.constant 0 : index
    %c0_3 = arith.constant 0 : index
    %2 = vector.load %arg2[%c0_2, %c0_3] : memref<2x32xf32, #tpu.memory_space<vmem>>, vector<2x32xf32>
    %cst = arith.constant dense<0.000000e+00> : vector<30x32xf32>
    %3 = tpu.matmul %1, %2, %cst {dimension_numbers = #tpu.dot_dimension_numbers<[1], [0], [0], [1], [0, 0, 1, 1], [], []>} : vector<30x2xf32>, vector<2x32xf32>, vector<30x32xf32> -> vector<30x32xf32>
    %c0_4 = arith.constant 0 : index
    %c0_5 = arith.constant 0 : index
    %4 = vector.load %arg3[%c0_4, %c0_5] : memref<1x32xf32, #tpu.memory_space<vmem>>, vector<1x32xf32>
    %5 = vector.broadcast %4 : vector<1x32xf32> to vector<30x32xf32>
    %6 = arith.addf %3, %5 : vector<30x32xf32>
    %cst_6 = arith.constant 0.000000e+00 : f32
    %7 = vector.broadcast %cst_6 : f32 to vector<30x32xf32>
    %8 = arith.maximumf %6, %7 : vector<30x32xf32>
    %c0_7 = arith.constant 0 : index
    %c0_8 = arith.constant 0 : index
    %9 = vector.load %arg4[%c0_7, %c0_8] : memref<32x64xf32, #tpu.memory_space<vmem>>, vector<32x64xf32>
    %cst_9 = arith.constant dense<0.000000e+00> : vector<30x64xf32>
    %10 = tpu.matmul %8, %9, %cst_9 {dimension_numbers = #tpu.dot_dimension_numbers<[1], [0], [0], [1], [0, 0, 1, 1], [], []>} : vector<30x32xf32>, vector<32x64xf32>, vector<30x64xf32> -> vector<30x64xf32>
    %c0_10 = arith.constant 0 : index
    %c0_11 = arith.constant 0 : index
    %11 = vector.load %arg5[%c0_10, %c0_11] : memref<1x64xf32, #tpu.memory_space<vmem>>, vector<1x64xf32>
    %12 = vector.broadcast %11 : vector<1x64xf32> to vector<30x64xf32>
    %13 = arith.addf %10, %12 : vector<30x64xf32>
    %cst_12 = arith.constant 0.000000e+00 : f32
    %14 = vector.broadcast %cst_12 : f32 to vector<30x64xf32>
    %15 = arith.maximumf %13, %14 : vector<30x64xf32>
    %c0_13 = arith.constant 0 : index
    %c0_14 = arith.constant 0 : index
    %16 = vector.load %arg6[%c0_13, %c0_14] : memref<64x128xf32, #tpu.memory_space<vmem>>, vector<64x128xf32>
    %cst_15 = arith.constant dense<0.000000e+00> : vector<30x128xf32>
    %17 = tpu.matmul %15, %16, %cst_15 {dimension_numbers = #tpu.dot_dimension_numbers<[1], [0], [0], [1], [0, 0, 1, 1], [], []>} : vector<30x64xf32>, vector<64x128xf32>, vector<30x128xf32> -> vector<30x128xf32>
    %c0_16 = arith.constant 0 : index
    %c0_17 = arith.constant 0 : index
    %18 = vector.load %arg7[%c0_16, %c0_17] : memref<1x128xf32, #tpu.memory_space<vmem>>, vector<1x128xf32>
    %19 = vector.broadcast %18 : vector<1x128xf32> to vector<30x128xf32>
    %20 = arith.addf %17, %19 : vector<30x128xf32>
    %cst_18 = arith.constant 0.000000e+00 : f32
    %21 = vector.broadcast %cst_18 : f32 to vector<30x128xf32>
    %22 = arith.maximumf %20, %21 : vector<30x128xf32>
    %cst_19 = arith.constant dense<0xFF800000> : vector<128xf32>
    %23 = vector.multi_reduction <maximumf>, %22, %cst_19 [0] : vector<30x128xf32> to vector<128xf32>
    %24 = vector.shape_cast %23 : vector<128xf32> to vector<1x128xf32>
    %c0_20 = arith.constant 0 : index
    %c0_21 = arith.constant 0 : index
    %25 = vector.load %arg8[%c0_20, %c0_21] : memref<128x64xf32, #tpu.memory_space<vmem>>, vector<128x64xf32>
    %cst_22 = arith.constant dense<0.000000e+00> : vector<1x64xf32>
    %26 = tpu.matmul %24, %25, %cst_22 {dimension_numbers = #tpu.dot_dimension_numbers<[1], [0], [0], [1], [0, 0, 1, 1], [], []>} : vector<1x128xf32>, vector<128x64xf32>, vector<1x64xf32> -> vector<1x64xf32>
    %c0_23 = arith.constant 0 : index
    %c0_24 = arith.constant 0 : index
    %27 = vector.load %arg9[%c0_23, %c0_24] : memref<1x64xf32, #tpu.memory_space<vmem>>, vector<1x64xf32>
    %28 = arith.addf %26, %27 : vector<1x64xf32>
    %cst_25 = arith.constant 0.000000e+00 : f32
    %29 = vector.broadcast %cst_25 : f32 to vector<1x64xf32>
    %30 = arith.maximumf %28, %29 : vector<1x64xf32>
    %c0_26 = arith.constant 0 : index
    %c0_27 = arith.constant 0 : index
    %31 = vector.load %arg10[%c0_26, %c0_27] : memref<64x32xf32, #tpu.memory_space<vmem>>, vector<64x32xf32>
    %cst_28 = arith.constant dense<0.000000e+00> : vector<1x32xf32>
    %32 = tpu.matmul %30, %31, %cst_28 {dimension_numbers = #tpu.dot_dimension_numbers<[1], [0], [0], [1], [0, 0, 1, 1], [], []>} : vector<1x64xf32>, vector<64x32xf32>, vector<1x32xf32> -> vector<1x32xf32>
    %c0_29 = arith.constant 0 : index
    %c0_30 = arith.constant 0 : index
    %33 = vector.load %arg11[%c0_29, %c0_30] : memref<1x32xf32, #tpu.memory_space<vmem>>, vector<1x32xf32>
    %34 = arith.addf %32, %33 : vector<1x32xf32>
    %cst_31 = arith.constant 0.000000e+00 : f32
    %35 = vector.broadcast %cst_31 : f32 to vector<1x32xf32>
    %36 = arith.maximumf %34, %35 : vector<1x32xf32>
    %c0_32 = arith.constant 0 : index
    %c0_33 = arith.constant 0 : index
    %37 = vector.load %arg12[%c0_32, %c0_33] : memref<32x128xf32, #tpu.memory_space<vmem>>, vector<32x128xf32>
    %cst_34 = arith.constant dense<0.000000e+00> : vector<1x128xf32>
    %38 = tpu.matmul %36, %37, %cst_34 {dimension_numbers = #tpu.dot_dimension_numbers<[1], [0], [0], [1], [0, 0, 1, 1], [], []>} : vector<1x32xf32>, vector<32x128xf32>, vector<1x128xf32> -> vector<1x128xf32>
    %c0_35 = arith.constant 0 : index
    %c0_36 = arith.constant 0 : index
    %39 = vector.load %arg13[%c0_35, %c0_36] : memref<1x128xf32, #tpu.memory_space<vmem>>, vector<1x128xf32>
    %40 = arith.addf %38, %39 : vector<1x128xf32>
    %41 = tpu.iota {dimensions = array<i32: 1>} : vector<1x128xi32>
    %c0_i32 = arith.constant 0 : i32
    %42 = vector.broadcast %c0_i32 : i32 to vector<1x128xi32>
    %43 = arith.cmpi eq, %41, %42 : vector<1x128xi32>
    %c3_i32 = arith.constant 3 : i32
    %44 = vector.broadcast %c3_i32 : i32 to vector<1x128xi32>
    %45 = arith.cmpi eq, %41, %44 : vector<1x128xi32>
    %46 = arith.ori %43, %45 : vector<1x128xi1>
    %cst_37 = arith.constant 1.000000e+00 : f32
    %cst_38 = arith.constant 0.000000e+00 : f32
    %47 = vector.broadcast %cst_37 : f32 to vector<1x128xf32>
    %48 = vector.broadcast %cst_38 : f32 to vector<1x128xf32>
    %49 = arith.select %46, %47, %48 : vector<1x128xi1>, vector<1x128xf32>
    %50 = arith.addf %40, %49 : vector<1x128xf32>
    %c0_39 = arith.constant 0 : index
    %c0_40 = arith.constant 0 : index
    %c0_41 = arith.constant 0 : index
    %51 = vector.load %arg14[%c0_39, %c0_40, %c0_41] : memref<1x1x128xf32, #tpu.memory_space<vmem>>, vector<1x1x128xf32>
    %52 = vector.shape_cast %51 : vector<1x1x128xf32> to vector<1x128xf32>
    %53 = vector.shape_cast %50 : vector<1x128xf32> to vector<1x1x128xf32>
    tpu.vector_store %arg14[%c0_39, %c0_40, %c0_41], %53 {strides = array<i32>} : memref<1x1x128xf32, #tpu.memory_space<vmem>>, vector<1x1x128xf32>,
    return
  }
  func.func @transform_0(%arg0: i32) -> (i32, i32, i32) {
    %c0_i32 = arith.constant 0 : i32
    %c0_i32_0 = arith.constant 0 : i32
    %c0_i32_1 = arith.constant 0 : i32
    return %arg0, %c0_i32, %c0_i32_0 : i32, i32, i32
  }
  func.func @transform_1(%arg0: i32) -> (i32, i32) {
    %c0_i32 = arith.constant 0 : i32
    %c0_i32_0 = arith.constant 0 : i32
    %c0_i32_1 = arith.constant 0 : i32
    return %c0_i32, %c0_i32_0 : i32, i32
  }
  func.func @transform_2(%arg0: i32) -> (i32, i32) {
    %c0_i32 = arith.constant 0 : i32
    %c0_i32_0 = arith.constant 0 : i32
    %c0_i32_1 = arith.constant 0 : i32
    return %c0_i32, %c0_i32_0 : i32, i32
  }
  func.func @transform_3(%arg0: i32) -> (i32, i32) {
    %c0_i32 = arith.constant 0 : i32
    %c0_i32_0 = arith.constant 0 : i32
    %c0_i32_1 = arith.constant 0 : i32
    return %c0_i32, %c0_i32_0 : i32, i32
  }
  func.func @transform_4(%arg0: i32) -> (i32, i32) {
    %c0_i32 = arith.constant 0 : i32
    %c0_i32_0 = arith.constant 0 : i32
    %c0_i32_1 = arith.constant 0 : i32
    return %c0_i32, %c0_i32_0 : i32, i32
  }
  func.func @transform_5(%arg0: i32) -> (i32, i32) {
    %c0_i32 = arith.constant 0 : i32
    %c0_i32_0 = arith.constant 0 : i32
    %c0_i32_1 = arith.constant 0 : i32
    return %c0_i32, %c0_i32_0 : i32, i32
  }
  func.func @transform_6(%arg0: i32) -> (i32, i32) {
    %c0_i32 = arith.constant 0 : i32
    %c0_i32_0 = arith.constant 0 : i32
    %c0_i32_1 = arith.constant 0 : i32
    return %c0_i32, %c0_i32_0 : i32, i32
  }
  func.func @transform_7(%arg0: i32) -> (i32, i32) {
    %c0_i32 = arith.constant 0 : i32
    %c0_i32_0 = arith.constant 0 : i32
    %c0_i32_1 = arith.constant 0 : i32
    return %c0_i32, %c0_i32_0 : i32, i32
  }
  func.func @transform_8(%arg0: i32) -> (i32, i32) {
    %c0_i32 = arith.constant 0 : i32
    %c0_i32_0 = arith.constant 0 : i32
    %c0_i32_1 = arith.constant 0 : i32
    return %c0_i32, %c0_i32_0 : i32, i32
  }
  func.func @transform_9(%arg0: i32) -> (i32, i32) {
    %c0_i32 = arith.constant 0 : i32
    %c0_i32_0 = arith.constant 0 : i32
    %c0_i32_1 = arith.constant 0 : i32
    return %c0_i32, %c0_i32_0 : i32, i32
  }
  func.func @transform_10(%arg0: i32) -> (i32, i32) {
    %c0_i32 = arith.constant 0 : i32
    %c0_i32_0 = arith.constant 0 : i32
    %c0_i32_1 = arith.constant 0 : i32
    return %c0_i32, %c0_i32_0 : i32, i32
  }
  func.func @transform_11(%arg0: i32) -> (i32, i32) {
    %c0_i32 = arith.constant 0 : i32
    %c0_i32_0 = arith.constant 0 : i32
    %c0_i32_1 = arith.constant 0 : i32
    return %c0_i32, %c0_i32_0 : i32, i32
  }
  func.func @transform_12(%arg0: i32) -> (i32, i32) {
    %c0_i32 = arith.constant 0 : i32
    %c0_i32_0 = arith.constant 0 : i32
    %c0_i32_1 = arith.constant 0 : i32
    return %c0_i32, %c0_i32_0 : i32, i32
  }
  func.func @transform_13(%arg0: i32) -> (i32, i32, i32) {
    %c0_i32 = arith.constant 0 : i32
    %c0_i32_0 = arith.constant 0 : i32
    %c0_i32_1 = arith.constant 0 : i32
    return %arg0, %c0_i32, %c0_i32_0 : i32, i32, i32
  }
}

</mosaic_0001>

<llo_original>
// kernel: tpu_custom_call.1
$region0: #{tpu_custom_call.1}
  #allocation0 [shape = 'u32[]', space=smem, size = 0x4, offset = 0x4, fixed_abs, tag = 'smem constant byte address 0x4 - core index']
  #allocation1 [shape = 'u32[144,128]{1,0:T(1,128)}', space=vmem, size = 0x12000, scoped, tag = 'internal scratch']
  %s0 = inlined_call_operand.vmem [shape: f32[2,30,2], index: 0, kind: input, shape index: {}]
  %s1 = inlined_call_operand.vmem [shape: f32[2,32], index: 1, kind: input, shape index: {}]
  %s2 = inlined_call_operand.vmem [shape: f32[1,32], index: 2, kind: input, shape index: {}]
  %s3 = inlined_call_operand.vmem [shape: f32[32,64], index: 3, kind: input, shape index: {}]
  %s4 = inlined_call_operand.vmem [shape: f32[1,64], index: 4, kind: input, shape index: {}]
  %s5 = inlined_call_operand.vmem [shape: f32[64,128], index: 5, kind: input, shape index: {}]
  %s6 = inlined_call_operand.vmem [shape: f32[1,128], index: 6, kind: input, shape index: {}]
  %s7 = inlined_call_operand.vmem [shape: f32[128,64], index: 7, kind: input, shape index: {}]
  %s8 = inlined_call_operand.vmem [shape: f32[1,64], index: 8, kind: input, shape index: {}]
  %s9 = inlined_call_operand.vmem [shape: f32[64,32], index: 9, kind: input, shape index: {}]
  %s10 = inlined_call_operand.vmem [shape: f32[1,32], index: 10, kind: input, shape index: {}]
  %s11 = inlined_call_operand.vmem [shape: f32[32,128], index: 11, kind: input, shape index: {}]
  %s12 = inlined_call_operand.vmem [shape: f32[1,128], index: 12, kind: input, shape index: {}]
  %s13 = inlined_call_operand.hbm [shape: f32[2,1,128], index: 13, kind: output, shape index: {}]
  %s14 = sld [smem:[#allocation0]]
  $region85: #{tpu_custom_call.1} parent=0
    _
  %s16 = ssub.s32 1, %s14
  %s17 = scalar_select 0, %s16, %s14
  $region1: #{tpu_custom_call.1} parent=0
    #allocation2 [shape = 'u8[1024]{0}', space=vmem, size = 0x400, scoped, tag = 'output window, operand 0']
    #allocation3 [shape = 's32[2]{0}', space=sflag, size = 0x8, scoped, tag = 'scoped memory for tpu_custom_call.1']
    %18 = vsyncpa [#allocation3], 0
    %s19 = scalar_lea.sflag [#allocation3], 1
    %20 = vsyncpa %s19, 0
    loop: start=0, step=1, limit=4
    $region2: #{tpu_custom_call.1} parent=1 // loop_pre_header
      _
    $region3: #{tpu_custom_call.1} parent=1 // loop_header
      %s22 = sphi 0, %s26
      %p23 = scmp.ge.s32.totalorder %s22, 4
      %s32 = sphi 0, %s34
      %s35 = sphi 0, %s32
      %s36 = sphi 0, %s35
      %s52 = sphi 0, %s36
      %s56 = sphi 0, %s56
      %s58 = sphi 0, %s56
      %s59 = sphi 0, %s58
      %s73 = sphi 0, %s59
      %s77 = sphi 0, %s77
      %s79 = sphi 0, %s77
      %s80 = sphi 0, %s79
      %s94 = sphi 0, %s80
      %s98 = sphi 0, %s98
      %s100 = sphi 0, %s98
      %s101 = sphi 0, %s100
      %s115 = sphi 0, %s101
      %s119 = sphi 0, %s119
      %s121 = sphi 0, %s119
      %s122 = sphi 0, %s121
      %s136 = sphi 0, %s122
      %s140 = sphi 0, %s140
      %s142 = sphi 0, %s140
      %s143 = sphi 0, %s142
      %s157 = sphi 0, %s143
      %s161 = sphi 0, %s161
      %s163 = sphi 0, %s161
      %s164 = sphi 0, %s163
      %s178 = sphi 0, %s164
      %s182 = sphi 0, %s182
      %s184 = sphi 0, %s182
      %s185 = sphi 0, %s184
      %s199 = sphi 0, %s185
      %s203 = sphi 0, %s203
      %s205 = sphi 0, %s203
      %s206 = sphi 0, %s205
      %s220 = sphi 0, %s206
      %s224 = sphi 0, %s224
      %s226 = sphi 0, %s224
      %s227 = sphi 0, %s226
      %s241 = sphi 0, %s227
      %s245 = sphi 0, %s245
      %s247 = sphi 0, %s245
      %s248 = sphi 0, %s247
      %s262 = sphi 0, %s248
      %s266 = sphi 0, %s266
      %s268 = sphi 0, %s266
      %s269 = sphi 0, %s268
      %s283 = sphi 0, %s269
      %s287 = sphi 0, %s287
      %s289 = sphi 0, %s287
      %s290 = sphi 0, %s289
      %s304 = sphi 0, %s290
      %s310 = sphi 0, %s312
      %s313 = sphi 0, %s310
      %s314 = sphi 0, %s313
      %s330 = sphi 0, %s314
    $region4: #{tpu_custom_call.1} parent=1 // loop_header_branch
      %25 = sbr.rel (%p23) target = $region8
    $region5: #{tpu_custom_call.1} parent=1 // loop_body
      %s27 = ssub.s32 %s22, 1
      %s28 = ssub.s32 %s22, 2
      %s29 = sadd.s32 %s22, 1
      %s30 = ssub.s32 %s22, %s29
      %p31 = scmp.eq.s32.totalorder %s30, 0
      %s33 = sadd.s32 %s32, 1
      %s34 = scalar_select %p31, %s32, %s33
      %p37 = pneg %p31
      %p38 = scmp.eq.s32.totalorder %s22, 1
      %p39 = por %p37, %p38
      %p40 = scmp.ne.s32.totalorder %s32, %s35
      %p41 = scmp.eq.s32.totalorder %s22, 0
      %p42 = por %p40, %p41
      %p43 = scmp.ne.s32.totalorder %s32, %s35
      %p44 = scmp.eq.s32.totalorder %s27, 1
      %p45 = por %p43, %p44
      %p46 = scmp.ne.s32.totalorder %s35, %s36
      %p47 = scmp.eq.s32.totalorder %s27, 0
      %p48 = por %p46, %p47
      %p49 = scmp.ne.s32.totalorder %s35, %s36
      %p50 = scmp.eq.s32.totalorder %s28, 1
      %p51 = por %p49, %p50
      %p53 = scmp.ne.s32.totalorder %s36, %s52
      %p54 = scmp.eq.s32.totalorder %s28, 0
      %p55 = por %p53, %p54
      %s57 = sadd.s32 %s56, 1
      %p60 = scmp.eq.s32.totalorder %s22, 1
      %p61 = scmp.ne.s32.totalorder %s56, %s58
      %p62 = scmp.eq.s32.totalorder %s22, 0
      %p63 = por %p61, %p62
      %p64 = scmp.ne.s32.totalorder %s56, %s58
      %p65 = scmp.eq.s32.totalorder %s27, 1
      %p66 = por %p64, %p65
      %p67 = scmp.ne.s32.totalorder %s58, %s59
      %p68 = scmp.eq.s32.totalorder %s27, 0
      %p69 = por %p67, %p68
      %p70 = scmp.ne.s32.totalorder %s58, %s59
      %p71 = scmp.eq.s32.totalorder %s28, 1
      %p72 = por %p70, %p71
      %p74 = scmp.ne.s32.totalorder %s59, %s73
      %p75 = scmp.eq.s32.totalorder %s28, 0
      %p76 = por %p74, %p75
      %s78 = sadd.s32 %s77, 1
      %p81 = scmp.eq.s32.totalorder %s22, 1
      %p82 = scmp.ne.s32.totalorder %s77, %s79
      %p83 = scmp.eq.s32.totalorder %s22, 0
      %p84 = por %p82, %p83
      %p85 = scmp.ne.s32.totalorder %s77, %s79
      %p86 = scmp.eq.s32.totalorder %s27, 1
      %p87 = por %p85, %p86
      %p88 = scmp.ne.s32.totalorder %s79, %s80
      %p89 = scmp.eq.s32.totalorder %s27, 0
      %p90 = por %p88, %p89
      %p91 = scmp.ne.s32.totalorder %s79, %s80
      %p92 = scmp.eq.s32.totalorder %s28, 1
      %p93 = por %p91, %p92
      %p95 = scmp.ne.s32.totalorder %s80, %s94
      %p96 = scmp.eq.s32.totalorder %s28, 0
      %p97 = por %p95, %p96
      %s99 = sadd.s32 %s98, 1
      %p102 = scmp.eq.s32.totalorder %s22, 1
      %p103 = scmp.ne.s32.totalorder %s98, %s100
      %p104 = scmp.eq.s32.totalorder %s22, 0
      %p105 = por %p103, %p104
      %p106 = scmp.ne.s32.totalorder %s98, %s100
      %p107 = scmp.eq.s32.totalorder %s27, 1
      %p108 = por %p106, %p107
      %p109 = scmp.ne.s32.totalorder %s100, %s101
      %p110 = scmp.eq.s32.totalorder %s27, 0
      %p111 = por %p109, %p110
      %p112 = scmp.ne.s32.totalorder %s100, %s101
      %p113 = scmp.eq.s32.totalorder %s28, 1
      %p114 = por %p112, %p113
      %p116 = scmp.ne.s32.totalorder %s101, %s115
      %p117 = scmp.eq.s32.totalorder %s28, 0
      %p118 = por %p116, %p117
      %s120 = sadd.s32 %s119, 1
      %p123 = scmp.eq.s32.totalorder %s22, 1
      %p124 = scmp.ne.s32.totalorder %s119, %s121
      %p125 = scmp.eq.s32.totalorder %s22, 0
      %p126 = por %p124, %p125
      %p127 = scmp.ne.s32.totalorder %s119, %s121
      %p128 = scmp.eq.s32.totalorder %s27, 1
      %p129 = por %p127, %p128
      %p130 = scmp.ne.s32.totalorder %s121, %s122
      %p131 = scmp.eq.s32.totalorder %s27, 0
      %p132 = por %p130, %p131
      %p133 = scmp.ne.s32.totalorder %s121, %s122
      %p134 = scmp.eq.s32.totalorder %s28, 1
      %p135 = por %p133, %p134
      %p137 = scmp.ne.s32.totalorder %s122, %s136
      %p138 = scmp.eq.s32.totalorder %s28, 0
      %p139 = por %p137, %p138
      %s141 = sadd.s32 %s140, 1
      %p144 = scmp.eq.s32.totalorder %s22, 1
      %p145 = scmp.ne.s32.totalorder %s140, %s142
      %p146 = scmp.eq.s32.totalorder %s22, 0
      %p147 = por %p145, %p146
      %p148 = scmp.ne.s32.totalorder %s140, %s142
      %p149 = scmp.eq.s32.totalorder %s27, 1
      %p150 = por %p148, %p149
      %p151 = scmp.ne.s32.totalorder %s142, %s143
      %p152 = scmp.eq.s32.totalorder %s27, 0
      %p153 = por %p151, %p152
      %p154 = scmp.ne.s32.totalorder %s142, %s143
      %p155 = scmp.eq.s32.totalorder %s28, 1
      %p156 = por %p154, %p155
      %p158 = scmp.ne.s32.totalorder %s143, %s157
      %p159 = scmp.eq.s32.totalorder %s28, 0
      %p160 = por %p158, %p159
      %s162 = sadd.s32 %s161, 1
      %p165 = scmp.eq.s32.totalorder %s22, 1
      %p166 = scmp.ne.s32.totalorder %s161, %s163
      %p167 = scmp.eq.s32.totalorder %s22, 0
      %p168 = por %p166, %p167
      %p169 = scmp.ne.s32.totalorder %s161, %s163
      %p170 = scmp.eq.s32.totalorder %s27, 1
      %p171 = por %p169, %p170
      %p172 = scmp.ne.s32.totalorder %s163, %s164
      %p173 = scmp.eq.s32.totalorder %s27, 0
      %p174 = por %p172, %p173
      %p175 = scmp.ne.s32.totalorder %s163, %s164
      %p176 = scmp.eq.s32.totalorder %s28, 1
      %p177 = por %p175, %p176
      %p179 = scmp.ne.s32.totalorder %s164, %s178
      %p180 = scmp.eq.s32.totalorder %s28, 0
      %p181 = por %p179, %p180
      %s183 = sadd.s32 %s182, 1
      %p186 = scmp.eq.s32.totalorder %s22, 1
      %p187 = scmp.ne.s32.totalorder %s182, %s184
      %p188 = scmp.eq.s32.totalorder %s22, 0
      %p189 = por %p187, %p188
      %p190 = scmp.ne.s32.totalorder %s182, %s184
      %p191 = scmp.eq.s32.totalorder %s27, 1
      %p192 = por %p190, %p191
      %p193 = scmp.ne.s32.totalorder %s184, %s185
      %p194 = scmp.eq.s32.totalorder %s27, 0
      %p195 = por %p193, %p194
      %p196 = scmp.ne.s32.totalorder %s184, %s185
      %p197 = scmp.eq.s32.totalorder %s28, 1
      %p198 = por %p196, %p197
      %p200 = scmp.ne.s32.totalorder %s185, %s199
      %p201 = scmp.eq.s32.totalorder %s28, 0
      %p202 = por %p200, %p201
      %s204 = sadd.s32 %s203, 1
      %p207 = scmp.eq.s32.totalorder %s22, 1
      %p208 = scmp.ne.s32.totalorder %s203, %s205
      %p209 = scmp.eq.s32.totalorder %s22, 0
      %p210 = por %p208, %p209
      %p211 = scmp.ne.s32.totalorder %s203, %s205
      %p212 = scmp.eq.s32.totalorder %s27, 1
      %p213 = por %p211, %p212
      %p214 = scmp.ne.s32.totalorder %s205, %s206
      %p215 = scmp.eq.s32.totalorder %s27, 0
      %p216 = por %p214, %p215
      %p217 = scmp.ne.s32.totalorder %s205, %s206
      %p218 = scmp.eq.s32.totalorder %s28, 1
      %p219 = por %p217, %p218
      %p221 = scmp.ne.s32.totalorder %s206, %s220
      %p222 = scmp.eq.s32.totalorder %s28, 0
      %p223 = por %p221, %p222
      %s225 = sadd.s32 %s224, 1
      %p228 = scmp.eq.s32.totalorder %s22, 1
      %p229 = scmp.ne.s32.totalorder %s224, %s226
      %p230 = scmp.eq.s32.totalorder %s22, 0
      %p231 = por %p229, %p230
      %p232 = scmp.ne.s32.totalorder %s224, %s226
      %p233 = scmp.eq.s32.totalorder %s27, 1
      %p234 = por %p232, %p233
      %p235 = scmp.ne.s32.totalorder %s226, %s227
      %p236 = scmp.eq.s32.totalorder %s27, 0
      %p237 = por %p235, %p236
      %p238 = scmp.ne.s32.totalorder %s226, %s227
      %p239 = scmp.eq.s32.totalorder %s28, 1
      %p240 = por %p238, %p239
      %p242 = scmp.ne.s32.totalorder %s227, %s241
      %p243 = scmp.eq.s32.totalorder %s28, 0
      %p244 = por %p242, %p243
      %s246 = sadd.s32 %s245, 1
      %p249 = scmp.eq.s32.totalorder %s22, 1
      %p250 = scmp.ne.s32.totalorder %s245, %s247
      %p251 = scmp.eq.s32.totalorder %s22, 0
      %p252 = por %p250, %p251
      %p253 = scmp.ne.s32.totalorder %s245, %s247
      %p254 = scmp.eq.s32.totalorder %s27, 1
      %p255 = por %p253, %p254
      %p256 = scmp.ne.s32.totalorder %s247, %s248
      %p257 = scmp.eq.s32.totalorder %s27, 0
      %p258 = por %p256, %p257
      %p259 = scmp.ne.s32.totalorder %s247, %s248
      %p260 = scmp.eq.s32.totalorder %s28, 1
      %p261 = por %p259, %p260
      %p263 = scmp.ne.s32.totalorder %s248, %s262
      %p264 = scmp.eq.s32.totalorder %s28, 0
      %p265 = por %p263, %p264
      %s267 = sadd.s32 %s266, 1
      %p270 = scmp.eq.s32.totalorder %s22, 1
      %p271 = scmp.ne.s32.totalorder %s266, %s268
      %p272 = scmp.eq.s32.totalorder %s22, 0
      %p273 = por %p271, %p272
      %p274 = scmp.ne.s32.totalorder %s266, %s268
      %p275 = scmp.eq.s32.totalorder %s27, 1
      %p276 = por %p274, %p275
      %p277 = scmp.ne.s32.totalorder %s268, %s269
      %p278 = scmp.eq.s32.totalorder %s27, 0
      %p279 = por %p277, %p278
      %p280 = scmp.ne.s32.totalorder %s268, %s269
      %p281 = scmp.eq.s32.totalorder %s28, 1
      %p282 = por %p280, %p281
      %p284 = scmp.ne.s32.totalorder %s269, %s283
      %p285 = scmp.eq.s32.totalorder %s28, 0
      %p286 = por %p284, %p285
      %s288 = sadd.s32 %s287, 1
      %p291 = scmp.eq.s32.totalorder %s22, 1
      %p292 = scmp.ne.s32.totalorder %s287, %s289
      %p293 = scmp.eq.s32.totalorder %s22, 0
      %p294 = por %p292, %p293
      %p295 = scmp.ne.s32.totalorder %s287, %s289
      %p296 = scmp.eq.s32.totalorder %s27, 1
      %p297 = por %p295, %p296
      %p298 = scmp.ne.s32.totalorder %s289, %s290
      %p299 = scmp.eq.s32.totalorder %s27, 0
      %p300 = por %p298, %p299
      %p301 = scmp.ne.s32.totalorder %s289, %s290
      %p302 = scmp.eq.s32.totalorder %s28, 1
      %p303 = por %p301, %p302
      %p305 = scmp.ne.s32.totalorder %s290, %s304
      %p306 = scmp.eq.s32.totalorder %s28, 0
      %p307 = por %p305, %p306
      %s308 = ssub.s32 %s22, %s29
      %p309 = scmp.eq.s32.totalorder %s308, 0
      %s311 = sadd.s32 %s310, 1
      %s312 = scalar_select %p309, %s310, %s311
      %p315 = pneg %p309
      %p316 = scmp.eq.s32.totalorder %s22, 1
      %p317 = por %p315, %p316
      %p318 = scmp.ne.s32.totalorder %s310, %s313
      %p319 = scmp.eq.s32.totalorder %s22, 0
      %p320 = por %p318, %p319
      %p321 = scmp.ne.s32.totalorder %s310, %s313
      %p322 = scmp.eq.s32.totalorder %s27, 1
      %p323 = por %p321, %p322
      %p324 = scmp.ne.s32.totalorder %s313, %s314
      %p325 = scmp.eq.s32.totalorder %s27, 0
      %p326 = por %p324, %p325
      %p327 = scmp.ne.s32.totalorder %s313, %s314
      %p328 = scmp.eq.s32.totalorder %s28, 1
      %p329 = por %p327, %p328
      %p331 = scmp.ne.s32.totalorder %s314, %s330
      %p332 = scmp.eq.s32.totalorder %s28, 0
      %p333 = por %p331, %p332
      %p334 = scmp.le.s32.totalorder 1, %s22
      %p335 = scmp.lt.s32.totalorder %s22, 3
      %p336 = pnand %p334, %p335
      %p337 = pneg %p336
      // Predicated region
      $region9: #{tpu_custom_call.1} parent=5 // pred_check
        _
      $region10: #{tpu_custom_call.1} parent=5 // pred_check_branch
        %339 = sbr.rel (%p336) target = $region12
      $region11: #{tpu_custom_call.1} parent=5 // pred_region
        %s340 = ssub.s32 %s22, 1
        // Predicated region
        $region13: #{tpu_custom_call.1} parent=11 // pred_check
          %p341 = pneg %p69
        $region14: #{tpu_custom_call.1} parent=11 // pred_check_branch
          %343 = sbr.rel (%p341) target = $region16
        $region15: #{tpu_custom_call.1} parent=11 // pred_region
          _
        $region16: #{tpu_custom_call.1} parent=11 // pred_fallthru
          _
        // Predicated region
        $region17: #{tpu_custom_call.1} parent=11 // pred_check
          %p344 = pneg %p90
        $region18: #{tpu_custom_call.1} parent=11 // pred_check_branch
          %346 = sbr.rel (%p344) target = $region20
        $region19: #{tpu_custom_call.1} parent=11 // pred_region
          _
        $region20: #{tpu_custom_call.1} parent=11 // pred_fallthru
          _
        // Predicated region
        $region21: #{tpu_custom_call.1} parent=11 // pred_check
          %p347 = pneg %p111
        $region22: #{tpu_custom_call.1} parent=11 // pred_check_branch
          %349 = sbr.rel (%p347) target = $region24
        $region23: #{tpu_custom_call.1} parent=11 // pred_region
          _
        $region24: #{tpu_custom_call.1} parent=11 // pred_fallthru
          _
        // Predicated region
        $region25: #{tpu_custom_call.1} parent=11 // pred_check
          %p350 = pneg %p132
        $region26: #{tpu_custom_call.1} parent=11 // pred_check_branch
          %352 = sbr.rel (%p350) target = $region28
        $region27: #{tpu_custom_call.1} parent=11 // pred_region
          _
        $region28: #{tpu_custom_call.1} parent=11 // pred_fallthru
          _
        // Predicated region
        $region29: #{tpu_custom_call.1} parent=11 // pred_check
          %p353 = pneg %p153
        $region30: #{tpu_custom_call.1} parent=11 // pred_check_branch
          %355 = sbr.rel (%p353) target = $region32
        $region31: #{tpu_custom_call.1} parent=11 // pred_region
          _
        $region32: #{tpu_custom_call.1} parent=11 // pred_fallthru
          _
        // Predicated region
        $region33: #{tpu_custom_call.1} parent=11 // pred_check
          %p356 = pneg %p174
        $region34: #{tpu_custom_call.1} parent=11 // pred_check_branch
          %358 = sbr.rel (%p356) target = $region36
        $region35: #{tpu_custom_call.1} parent=11 // pred_region
          _
        $region36: #{tpu_custom_call.1} parent=11 // pred_fallthru
          _
        // Predicated region
        $region37: #{tpu_custom_call.1} parent=11 // pred_check
          %p359 = pneg %p195
        $region38: #{tpu_custom_call.1} parent=11 // pred_check_branch
          %361 = sbr.rel (%p359) target = $region40
        $region39: #{tpu_custom_call.1} parent=11 // pred_region
          _
        $region40: #{tpu_custom_call.1} parent=11 // pred_fallthru
          _
        // Predicated region
        $region41: #{tpu_custom_call.1} parent=11 // pred_check
          %p362 = pneg %p216
        $region42: #{tpu_custom_call.1} parent=11 // pred_check_branch
          %364 = sbr.rel (%p362) target = $region44
        $region43: #{tpu_custom_call.1} parent=11 // pred_region
          _
        $region44: #{tpu_custom_call.1} parent=11 // pred_fallthru
          _
        // Predicated region
        $region45: #{tpu_custom_call.1} parent=11 // pred_check
          %p365 = pneg %p237
        $region46: #{tpu_custom_call.1} parent=11 // pred_check_branch
          %367 = sbr.rel (%p365) target = $region48
        $region47: #{tpu_custom_call.1} parent=11 // pred_region
          _
        $region48: #{tpu_custom_call.1} parent=11 // pred_fallthru
          _
        // Predicated region
        $region49: #{tpu_custom_call.1} parent=11 // pred_check
          %p368 = pneg %p258
        $region50: #{tpu_custom_call.1} parent=11 // pred_check_branch
          %370 = sbr.rel (%p368) target = $region52
        $region51: #{tpu_custom_call.1} parent=11 // pred_region
          _
        $region52: #{tpu_custom_call.1} parent=11 // pred_fallthru
          _
        // Predicated region
        $region53: #{tpu_custom_call.1} parent=11 // pred_check
          %p371 = pneg %p279
        $region54: #{tpu_custom_call.1} parent=11 // pred_check_branch
          %373 = sbr.rel (%p371) target = $region56
        $region55: #{tpu_custom_call.1} parent=11 // pred_region
          _
        $region56: #{tpu_custom_call.1} parent=11 // pred_fallthru
          _
        // Predicated region
        $region57: #{tpu_custom_call.1} parent=11 // pred_check
          %p374 = pneg %p300
        $region58: #{tpu_custom_call.1} parent=11 // pred_check_branch
          %376 = sbr.rel (%p374) target = $region60
        $region59: #{tpu_custom_call.1} parent=11 // pred_region
          _
        $region60: #{tpu_custom_call.1} parent=11 // pred_fallthru
          _
      $region12: #{tpu_custom_call.1} parent=5 // pred_fallthru
        _
      %p377 = scmp.lt.s32.totalorder %s22, 2
      // Predicated region
      $region61: #{tpu_custom_call.1} parent=5 // pred_check
        %p378 = pneg %p377
      $region62: #{tpu_custom_call.1} parent=5 // pred_check_branch
        %380 = sbr.rel (%p378) target = $region64
      $region63: #{tpu_custom_call.1} parent=5 // pred_region
        // Predicated region
        $region65: #{tpu_custom_call.1} parent=63 // pred_check
          %p381 = pneg %p42
        $region66: #{tpu_custom_call.1} parent=63 // pred_check_branch
          %383 = sbr.rel (%p381) target = $region68
        $region67: #{tpu_custom_call.1} parent=63 // pred_region
          %p384 = scmp.lt.s32.totalorder %s22, 1
          %s385 = scalar_select %p384, %s22, 1
          %s386 = smul.addr %s385, 4
          %s387 = smul.addr %s386, 8
          %s388 = scalar_lea.vmem %s0, %s387
        $region68: #{tpu_custom_call.1} parent=63 // pred_fallthru
          _
      $region64: #{tpu_custom_call.1} parent=5 // pred_fallthru
        _
      %p389 = scmp.le.s32.totalorder 1, %s22
      %p390 = scmp.lt.s32.totalorder %s22, 3
      %p391 = pnand %p389, %p390
      %p392 = pneg %p391
      // Predicated region
      $region69: #{tpu_custom_call.1} parent=5 // pred_check
        _
      $region70: #{tpu_custom_call.1} parent=5 // pred_check_branch
        %394 = sbr.rel (%p391) target = $region72
      $region71: #{tpu_custom_call.1} parent=5 // pred_region
        %s395 = ssub.s32 %s22, 1
        %p396 = scmp.lt.s32.totalorder %s27, 1
        %s397 = scalar_select %p396, %s27, 1
        %s398 = smul.addr %s397, 4
        %s399 = smul.addr %s398, 8
        %s400 = scalar_lea.vmem %s0, %s399
        %p401 = pneg %p48
        %p402 = pneg %p45
        %p403 = pneg %p69
        %p404 = pneg %p66
        %p405 = pneg %p90
        %p406 = pneg %p87
        %p407 = pneg %p111
        %p408 = pneg %p108
        %p409 = pneg %p132
        %p410 = pneg %p129
        %p411 = pneg %p153
        %p412 = pneg %p150
        %p413 = pneg %p174
        %p414 = pneg %p171
        %p415 = pneg %p195
        %p416 = pneg %p192
        %p417 = pneg %p216
        %p418 = pneg %p213
        %p419 = pneg %p237
        %p420 = pneg %p234
        %p421 = pneg %p258
        %p422 = pneg %p255
        %p423 = pneg %p279
        %p424 = pneg %p276
        %p425 = pneg %p300
        %p426 = pneg %p297
        %p427 = pneg %p326
        %p428 = pneg %p323
        %s429 = sand.u32 %s313, 1
        %s430 = scalar_lea.sflag [#allocation3], %s429
        %s431 = sand.u32 %s313, 1
        %s432 = scalar_lea.vmem [#allocation2], %s431
        %p433 = scmp.lt.s32.totalorder %s27, 1
        %s434 = scalar_select %p433, %s27, 1
        %s435 = smul.addr %s434, 4
        %s436 = smul.addr %s435, 8
        %s437 = scalar_lea.vmem %s0, %s436
        %v438 = vld [vmem:[%s437] sm:$0xff]
        %v439 = vld [vmem:[%s437 + $0x8] sm:$0xff]
        %v440 = vld [vmem:[%s437 + $0x10] sm:$0xff]
        %v441 = vld [vmem:[%s437 + $0x18] sm:$0x3f]
        %v442 = vld [vmem:[%s1] sm:$0x3]
        %v443 = vld [vmem:[%s2] sm:$0x1]
        %v445 = vlaneseq
        %v446 = vshrl.u32 %v445, 7
        %v447 = vsub.s32 0, %v446
        %v448 = vrot.slane %v443, %v447
        %vm450 = vcmask 15360
        %v452 = vsel %vm450, %v438, 0
        %v455 = vsel %vm450, %v439, 0
        %v458 = vsel %vm450, %v440, 0
        %v461 = vsel %vm450, %v441, 0
        %vm463 = vcmask 1041408
        %v465 = vsel %vm463, %v442, 0
        %467 = vmatprep.subr.mxu0 0.0
        %468 = vmatpush1.msra.mxu0 0.0
        %469 = vmatprep.subr.mxu0 0.0
        %470 = vmatpush1.msra.mxu0 0.0
        %471 = vmatprep.subr.mxu0 0.0
        %472 = vmatpush1.msra.mxu0 0.0
        %473 = vmatprep.subr.mxu0 0.0
        %474 = vmatpush1.msra.mxu0 0.0
        %475 = vmatprep.subr.mxu0 0.0
        %476 = vmatpush1.msra.mxu0 0.0
        %477 = vmatprep.subr.mxu0 0.0
        %478 = vmatpush1.msra.mxu0 0.0
        %479 = vmatprep.subr.mxu0 0.0
        %480 = vmatpush1.msra.mxu0 0.0
        %481 = vmatprep.subr.mxu0 0.0
        %482 = vmatpush1.msra.mxu0 0.0
        %483 = vmatprep.subr.mxu0 0.0
        %484 = vmatpush1.msra.mxu0 0.0
        %485 = vmatprep.subr.mxu0 0.0
        %486 = vmatpush1.msra.mxu0 0.0
        %487 = vmatprep.subr.mxu0 0.0
        %488 = vmatpush1.msra.mxu0 0.0
        %489 = vmatprep.subr.mxu0 0.0
        %490 = vmatpush1.msra.mxu0 0.0
        %491 = vmatprep.subr.mxu0 0.0
        %492 = vmatpush1.msra.mxu0 0.0
        %493 = vmatprep.subr.mxu0 0.0
        %494 = vmatpush1.msra.mxu0 0.0
        %495 = vmatprep.subr.mxu0 0.0
        %496 = vmatpush1.msra.mxu0 0.0
        %497 = vmatprep.subr.mxu0 0.0
        %498 = vmatpush1.msra.mxu0 %v465
        %499 = vmatprep.subr.mxu0 0.0
        %500 = vmatpush2.msra.mxu0 0.0
        %501 = vmatprep.subr.mxu0 0.0
        %502 = vmatpush2.msra.mxu0 0.0
        %503 = vmatprep.subr.mxu0 0.0
        %504 = vmatpush2.msra.mxu0 0.0
        %505 = vmatprep.subr.mxu0 0.0
        %506 = vmatpush2.msra.mxu0 0.0
        %507 = vmatprep.subr.mxu0 0.0
        %508 = vmatpush2.msra.mxu0 0.0
        %509 = vmatprep.subr.mxu0 0.0
        %510 = vmatpush2.msra.mxu0 0.0
        %511 = vmatprep.subr.mxu0 0.0
        %512 = vmatpush2.msra.mxu0 0.0
        %513 = vmatprep.subr.mxu0 0.0
        %514 = vmatpush2.msra.mxu0 0.0
        %515 = vmatprep.subr.mxu0 0.0
        %516 = vmatpush2.msra.mxu0 0.0
        %517 = vmatprep.subr.mxu0 0.0
        %518 = vmatpush2.msra.mxu0 0.0
        %519 = vmatprep.subr.mxu0 0.0
        %520 = vmatpush2.msra.mxu0 0.0
        %521 = vmatprep.subr.mxu0 0.0
        %522 = vmatpush2.msra.mxu0 0.0
        %523 = vmatprep.subr.mxu0 0.0
        %524 = vmatpush2.msra.mxu0 0.0
        %525 = vmatprep.subr.mxu0 0.0
        %526 = vmatpush2.msra.mxu0 0.0
        %527 = vmatprep.subr.mxu0 0.0
        %528 = vmatpush2.msra.mxu0 0.0
        %529 = vmatprep.subr.mxu0 0.0
        %530 = vmatpush2.msra.mxu0 0.0
        %531 = vmatprep.mubr.f32.mxu0 0.0
        %532 = vmatmul.mubr.f32.gmra.mxu0 %v452
        %v533 = vpop.f32.mrf.mxu0
        %v534 = vadd.f32 %v448, %v533
        %v535 = vpop.f32.mrf.mxu0
        %536 = vmatprep.mubr.f32.mxu0 0.0
        %537 = vmatmul.mubr.f32.gmra.mxu0 %v455
        %v538 = vpop.f32.mrf.mxu0
        %v539 = vadd.f32 %v448, %v538
        %v540 = vpop.f32.mrf.mxu0
        %541 = vmatprep.mubr.f32.mxu0 0.0
        %542 = vmatmul.mubr.f32.gmra.mxu0 %v458
        %v543 = vpop.f32.mrf.mxu0
        %v544 = vadd.f32 %v448, %v543
        %v545 = vpop.f32.mrf.mxu0
        %546 = vmatprep.mubr.f32.mxu0 0.0
        %547 = vmatmul.mubr.f32.gmra.mxu0 %v461
        %v548 = vpop.f32.mrf.mxu0
        %v549 = vadd.f32 %v448, %v548
        %v550 = vpop.f32.mrf.mxu0
        %551 = vdwg.mxu0
        %v552 = vmax.f32 %v534, 0.0
        %v553 = vmax.f32 %v539, 0.0
        %v554 = vmax.f32 %v544, 0.0
        %v555 = vmax.f32 %v549, 0.0
        %v556 = vld [vmem:[%s3] sm:$0xff]
        %v557 = vld [vmem:[%s3 + $0x8] sm:$0xff]
        %v558 = vld [vmem:[%s3 + $0x10] sm:$0xff]
        %v559 = vld [vmem:[%s3 + $0x18] sm:$0xff]
        %v560 = vld [vmem:[%s4] sm:$0x1]
        %v562 = vlaneseq
        %v563 = vshrl.u32 %v562, 7
        %v564 = vsub.s32 0, %v563
        %v565 = vrot.slane %v560, %v564
        %vm567 = vcmask 261120
        %v569 = vsel %vm567, %v552, 0
        %v572 = vsel %vm567, %v553, 0
        %v575 = vsel %vm567, %v554, 0
        %v578 = vsel %vm567, %v555, 0
        %580 = vmatprep.subr.mxu0 0.0
        %581 = vmatpush1.msra.mxu0 0.0
        %582 = vmatprep.subr.mxu0 0.0
        %583 = vmatpush1.msra.mxu0 0.0
        %584 = vmatprep.subr.mxu0 0.0
        %585 = vmatpush1.msra.mxu0 0.0
        %586 = vmatprep.subr.mxu0 0.0
        %587 = vmatpush1.msra.mxu0 0.0
        %588 = vmatprep.subr.mxu0 0.0
        %589 = vmatpush1.msra.mxu0 0.0
        %590 = vmatprep.subr.mxu0 0.0
        %591 = vmatpush1.msra.mxu0 0.0
        %592 = vmatprep.subr.mxu0 0.0
        %593 = vmatpush1.msra.mxu0 0.0
        %594 = vmatprep.subr.mxu0 0.0
        %595 = vmatpush1.msra.mxu0 0.0
        %596 = vmatprep.subr.mxu0 0.0
        %597 = vmatpush1.msra.mxu0 0.0
        %598 = vmatprep.subr.mxu0 0.0
        %599 = vmatpush1.msra.mxu0 0.0
        %600 = vmatprep.subr.mxu0 0.0
        %601 = vmatpush1.msra.mxu0 0.0
        %602 = vmatprep.subr.mxu0 0.0
        %603 = vmatpush1.msra.mxu0 0.0
        %604 = vmatprep.subr.mxu0 0.0
        %605 = vmatpush1.msra.mxu0 %v559
        %606 = vmatprep.subr.mxu0 0.0
        %607 = vmatpush1.msra.mxu0 %v558
        %608 = vmatprep.subr.mxu0 0.0
        %609 = vmatpush1.msra.mxu0 %v557
        %610 = vmatprep.subr.mxu0 0.0
        %611 = vmatpush1.msra.mxu0 %v556
        %612 = vmatprep.subr.mxu0 0.0
        %613 = vmatpush2.msra.mxu0 0.0
        %614 = vmatprep.subr.mxu0 0.0
        %615 = vmatpush2.msra.mxu0 0.0
        %616 = vmatprep.subr.mxu0 0.0
        %617 = vmatpush2.msra.mxu0 0.0
        %618 = vmatprep.subr.mxu0 0.0
        %619 = vmatpush2.msra.mxu0 0.0
        %620 = vmatprep.subr.mxu0 0.0
        %621 = vmatpush2.msra.mxu0 0.0
        %622 = vmatprep.subr.mxu0 0.0
        %623 = vmatpush2.msra.mxu0 0.0
        %624 = vmatprep.subr.mxu0 0.0
        %625 = vmatpush2.msra.mxu0 0.0
        %626 = vmatprep.subr.mxu0 0.0
        %627 = vmatpush2.msra.mxu0 0.0
        %628 = vmatprep.subr.mxu0 0.0
        %629 = vmatpush2.msra.mxu0 0.0
        %630 = vmatprep.subr.mxu0 0.0
        %631 = vmatpush2.msra.mxu0 0.0
        %632 = vmatprep.subr.mxu0 0.0
        %633 = vmatpush2.msra.mxu0 0.0
        %634 = vmatprep.subr.mxu0 0.0
        %635 = vmatpush2.msra.mxu0 0.0
        %636 = vmatprep.subr.mxu0 0.0
        %637 = vmatpush2.msra.mxu0 0.0
        %638 = vmatprep.subr.mxu0 0.0
        %639 = vmatpush2.msra.mxu0 0.0
        %640 = vmatprep.subr.mxu0 0.0
        %641 = vmatpush2.msra.mxu0 0.0
        %642 = vmatprep.subr.mxu0 0.0
        %643 = vmatpush2.msra.mxu0 0.0
        %644 = vmatprep.mubr.f32.mxu0 0.0
        %645 = vmatmul.mubr.f32.gmra.mxu0 %v569
        %v646 = vpop.f32.mrf.mxu0
        %v647 = vadd.f32 %v565, %v646
        %v648 = vpop.f32.mrf.mxu0
        %649 = vmatprep.mubr.f32.mxu0 0.0
        %650 = vmatmul.mubr.f32.gmra.mxu0 %v572
        %v651 = vpop.f32.mrf.mxu0
        %v652 = vadd.f32 %v565, %v651
        %v653 = vpop.f32.mrf.mxu0
        %654 = vmatprep.mubr.f32.mxu0 0.0
        %655 = vmatmul.mubr.f32.gmra.mxu0 %v575
        %v656 = vpop.f32.mrf.mxu0
        %v657 = vadd.f32 %v565, %v656
        %v658 = vpop.f32.mrf.mxu0
        %659 = vmatprep.mubr.f32.mxu0 0.0
        %660 = vmatmul.mubr.f32.gmra.mxu0 %v578
        %v661 = vpop.f32.mrf.mxu0
        %v662 = vadd.f32 %v565, %v661
        %v663 = vpop.f32.mrf.mxu0
        %664 = vdwg.mxu0
        %v665 = vmax.f32 %v647, 0.0
        %v666 = vmax.f32 %v652, 0.0
        %v667 = vmax.f32 %v657, 0.0
        %v668 = vmax.f32 %v662, 0.0
        %v669 = vld [vmem:[%s5] sm:$0xff]
        %v670 = vld [vmem:[%s5 + $0x8] sm:$0xff]
        %v671 = vld [vmem:[%s5 + $0x10] sm:$0xff]
        %v672 = vld [vmem:[%s5 + $0x18] sm:$0xff]
        %v673 = vld [vmem:[%s5 + $0x20] sm:$0xff]
        %v674 = vld [vmem:[%s5 + $0x28] sm:$0xff]
        %v675 = vld [vmem:[%s5 + $0x30] sm:$0xff]
        %v676 = vld [vmem:[%s5 + $0x38] sm:$0xff]
        %v677 = vld [vmem:[%s6] sm:$0x1]
        %v679 = vlaneseq
        %v680 = vshrl.u32 %v679, 7
        %v681 = vsub.s32 0, %v680
        %v682 = vrot.slane %v677, %v681
        %vm684 = vcmask 523264
        %v686 = vsel %vm684, %v665, 0
        %v689 = vsel %vm684, %v666, 0
        %v692 = vsel %vm684, %v667, 0
        %v695 = vsel %vm684, %v668, 0
        %697 = vmatprep.subr.mxu0 0.0
        %698 = vmatpush1.msra.mxu0 0.0
        %699 = vmatprep.subr.mxu0 0.0
        %700 = vmatpush1.msra.mxu0 0.0
        %701 = vmatprep.subr.mxu0 0.0
        %702 = vmatpush1.msra.mxu0 0.0
        %703 = vmatprep.subr.mxu0 0.0
        %704 = vmatpush1.msra.mxu0 0.0
        %705 = vmatprep.subr.mxu0 0.0
        %706 = vmatpush1.msra.mxu0 0.0
        %707 = vmatprep.subr.mxu0 0.0
        %708 = vmatpush1.msra.mxu0 0.0
        %709 = vmatprep.subr.mxu0 0.0
        %710 = vmatpush1.msra.mxu0 0.0
        %711 = vmatprep.subr.mxu0 0.0
        %712 = vmatpush1.msra.mxu0 0.0
        %713 = vmatprep.subr.mxu0 0.0
        %714 = vmatpush1.msra.mxu0 %v676
        %715 = vmatprep.subr.mxu0 0.0
        %716 = vmatpush1.msra.mxu0 %v675
        %717 = vmatprep.subr.mxu0 0.0
        %718 = vmatpush1.msra.mxu0 %v674
        %719 = vmatprep.subr.mxu0 0.0
        %720 = vmatpush1.msra.mxu0 %v673
        %721 = vmatprep.subr.mxu0 0.0
        %722 = vmatpush1.msra.mxu0 %v672
        %723 = vmatprep.subr.mxu0 0.0
        %724 = vmatpush1.msra.mxu0 %v671
        %725 = vmatprep.subr.mxu0 0.0
        %726 = vmatpush1.msra.mxu0 %v670
        %727 = vmatprep.subr.mxu0 0.0
        %728 = vmatpush1.msra.mxu0 %v669
        %729 = vmatprep.subr.mxu0 0.0
        %730 = vmatpush2.msra.mxu0 0.0
        %731 = vmatprep.subr.mxu0 0.0
        %732 = vmatpush2.msra.mxu0 0.0
        %733 = vmatprep.subr.mxu0 0.0
        %734 = vmatpush2.msra.mxu0 0.0
        %735 = vmatprep.subr.mxu0 0.0
        %736 = vmatpush2.msra.mxu0 0.0
        %737 = vmatprep.subr.mxu0 0.0
        %738 = vmatpush2.msra.mxu0 0.0
        %739 = vmatprep.subr.mxu0 0.0
        %740 = vmatpush2.msra.mxu0 0.0
        %741 = vmatprep.subr.mxu0 0.0
        %742 = vmatpush2.msra.mxu0 0.0
        %743 = vmatprep.subr.mxu0 0.0
        %744 = vmatpush2.msra.mxu0 0.0
        %745 = vmatprep.subr.mxu0 0.0
        %746 = vmatpush2.msra.mxu0 0.0
        %747 = vmatprep.subr.mxu0 0.0
        %748 = vmatpush2.msra.mxu0 0.0
        %749 = vmatprep.subr.mxu0 0.0
        %750 = vmatpush2.msra.mxu0 0.0
        %751 = vmatprep.subr.mxu0 0.0
        %752 = vmatpush2.msra.mxu0 0.0
        %753 = vmatprep.subr.mxu0 0.0
        %754 = vmatpush2.msra.mxu0 0.0
        %755 = vmatprep.subr.mxu0 0.0
        %756 = vmatpush2.msra.mxu0 0.0
        %757 = vmatprep.subr.mxu0 0.0
        %758 = vmatpush2.msra.mxu0 0.0
        %759 = vmatprep.subr.mxu0 0.0
        %760 = vmatpush2.msra.mxu0 0.0
        %761 = vmatprep.mubr.f32.mxu0 0.0
        %762 = vmatmul.mubr.f32.gmra.mxu0 %v686
        %v763 = vpop.f32.mrf.mxu0
        %v764 = vadd.f32 %v682, %v763
        %v765 = vpop.f32.mrf.mxu0
        %766 = vmatprep.mubr.f32.mxu0 0.0
        %767 = vmatmul.mubr.f32.gmra.mxu0 %v689
        %v768 = vpop.f32.mrf.mxu0
        %v769 = vadd.f32 %v682, %v768
        %v770 = vpop.f32.mrf.mxu0
        %771 = vmatprep.mubr.f32.mxu0 0.0
        %772 = vmatmul.mubr.f32.gmra.mxu0 %v692
        %v773 = vpop.f32.mrf.mxu0
        %v774 = vadd.f32 %v682, %v773
        %v775 = vpop.f32.mrf.mxu0
        %776 = vmatprep.mubr.f32.mxu0 0.0
        %777 = vmatmul.mubr.f32.gmra.mxu0 %v695
        %v778 = vpop.f32.mrf.mxu0
        %v779 = vadd.f32 %v682, %v778
        %v780 = vpop.f32.mrf.mxu0
        %781 = vdwg.mxu0
        %v782 = vmax.f32 %v764, 0.0
        %v783 = vmax.f32 %v769, 0.0
        %v784 = vmax.f32 %v774, 0.0
        %v785 = vmax.f32 %v779, 0.0
        %vm786 = vcmask 1045504
        %v787 = vsel %vm786, %v785, -inf
        %v788 = vmax.f32 %v782, %v783
        %v789 = vmax.f32 %v784, %v787
        %v790 = vmax.f32 %v788, %v789
        %v791 = vrot.slane %v790, 4
        %v792 = vmax.f32 %v790, %v791
        %v793 = vrot.slane %v792, 2
        %v794 = vmax.f32 %v792, %v793
        %v795 = vrot.slane %v794, 1
        %v796 = vmax.f32 %v794, %v795
        %v797 = vld [vmem:[%s7] sm:$0xff]
        %v798 = vld [vmem:[%s7 + $0x8] sm:$0xff]
        %v799 = vld [vmem:[%s7 + $0x10] sm:$0xff]
        %v800 = vld [vmem:[%s7 + $0x18] sm:$0xff]
        %v801 = vld [vmem:[%s7 + $0x20] sm:$0xff]
        %v802 = vld [vmem:[%s7 + $0x28] sm:$0xff]
        %v803 = vld [vmem:[%s7 + $0x30] sm:$0xff]
        %v804 = vld [vmem:[%s7 + $0x38] sm:$0xff]
        %v805 = vld [vmem:[%s7 + $0x40] sm:$0xff]
        %v806 = vld [vmem:[%s7 + $0x48] sm:$0xff]
        %v807 = vld [vmem:[%s7 + $0x50] sm:$0xff]
        %v808 = vld [vmem:[%s7 + $0x58] sm:$0xff]
        %v809 = vld [vmem:[%s7 + $0x60] sm:$0xff]
        %v810 = vld [vmem:[%s7 + $0x68] sm:$0xff]
        %v811 = vld [vmem:[%s7 + $0x70] sm:$0xff]
        %v812 = vld [vmem:[%s7 + $0x78] sm:$0xff]
        %v813 = vld [vmem:[%s8] sm:$0x1]
        %814 = vmatprep.subr.mxu0 0.0
        %815 = vmatpush1.msra.mxu0 %v812
        %816 = vmatprep.subr.mxu0 0.0
        %817 = vmatpush1.msra.mxu0 %v811
        %818 = vmatprep.subr.mxu0 0.0
        %819 = vmatpush1.msra.mxu0 %v810
        %820 = vmatprep.subr.mxu0 0.0
        %821 = vmatpush1.msra.mxu0 %v809
        %822 = vmatprep.subr.mxu0 0.0
        %823 = vmatpush1.msra.mxu0 %v808
        %824 = vmatprep.subr.mxu0 0.0
        %825 = vmatpush1.msra.mxu0 %v807
        %826 = vmatprep.subr.mxu0 0.0
        %827 = vmatpush1.msra.mxu0 %v806
        %828 = vmatprep.subr.mxu0 0.0
        %829 = vmatpush1.msra.mxu0 %v805
        %830 = vmatprep.subr.mxu0 0.0
        %831 = vmatpush1.msra.mxu0 %v804
        %832 = vmatprep.subr.mxu0 0.0
        %833 = vmatpush1.msra.mxu0 %v803
        %834 = vmatprep.subr.mxu0 0.0
        %835 = vmatpush1.msra.mxu0 %v802
        %836 = vmatprep.subr.mxu0 0.0
        %837 = vmatpush1.msra.mxu0 %v801
        %838 = vmatprep.subr.mxu0 0.0
        %839 = vmatpush1.msra.mxu0 %v800
        %840 = vmatprep.subr.mxu0 0.0
        %841 = vmatpush1.msra.mxu0 %v799
        %842 = vmatprep.subr.mxu0 0.0
        %843 = vmatpush1.msra.mxu0 %v798
        %844 = vmatprep.subr.mxu0 0.0
        %845 = vmatpush1.msra.mxu0 %v797
        %846 = vmatprep.subr.mxu0 0.0
        %847 = vmatpush2.msra.mxu0 0.0
        %848 = vmatprep.subr.mxu0 0.0
        %849 = vmatpush2.msra.mxu0 0.0
        %850 = vmatprep.subr.mxu0 0.0
        %851 = vmatpush2.msra.mxu0 0.0
        %852 = vmatprep.subr.mxu0 0.0
        %853 = vmatpush2.msra.mxu0 0.0
        %854 = vmatprep.subr.mxu0 0.0
        %855 = vmatpush2.msra.mxu0 0.0
        %856 = vmatprep.subr.mxu0 0.0
        %857 = vmatpush2.msra.mxu0 0.0
        %858 = vmatprep.subr.mxu0 0.0
        %859 = vmatpush2.msra.mxu0 0.0
        %860 = vmatprep.subr.mxu0 0.0
        %861 = vmatpush2.msra.mxu0 0.0
        %862 = vmatprep.subr.mxu0 0.0
        %863 = vmatpush2.msra.mxu0 0.0
        %864 = vmatprep.subr.mxu0 0.0
        %865 = vmatpush2.msra.mxu0 0.0
        %866 = vmatprep.subr.mxu0 0.0
        %867 = vmatpush2.msra.mxu0 0.0
        %868 = vmatprep.subr.mxu0 0.0
        %869 = vmatpush2.msra.mxu0 0.0
        %870 = vmatprep.subr.mxu0 0.0
        %871 = vmatpush2.msra.mxu0 0.0
        %872 = vmatprep.subr.mxu0 0.0
        %873 = vmatpush2.msra.mxu0 0.0
        %874 = vmatprep.subr.mxu0 0.0
        %875 = vmatpush2.msra.mxu0 0.0
        %876 = vmatprep.subr.mxu0 0.0
        %877 = vmatpush2.msra.mxu0 0.0
        %878 = vmatprep.mubr.f32.mxu0 0.0
        %879 = vmatmul.mubr.f32.gmra.mxu0 %v796
        %v880 = vpop.f32.mrf.mxu0
        %v881 = vadd.f32 %v813, %v880
        %v882 = vpop.f32.mrf.mxu0
        %883 = vdwg.mxu0
        %v884 = vmax.f32 %v881, 0.0
        %v885 = vld [vmem:[%s9] sm:$0xff]
        %v886 = vld [vmem:[%s9 + $0x8] sm:$0xff]
        %v887 = vld [vmem:[%s9 + $0x10] sm:$0xff]
        %v888 = vld [vmem:[%s9 + $0x18] sm:$0xff]
        %v889 = vld [vmem:[%s9 + $0x20] sm:$0xff]
        %v890 = vld [vmem:[%s9 + $0x28] sm:$0xff]
        %v891 = vld [vmem:[%s9 + $0x30] sm:$0xff]
        %v892 = vld [vmem:[%s9 + $0x38] sm:$0xff]
        %v893 = vld [vmem:[%s10] sm:$0x1]
        %v895 = vsel %vm684, %v884, 0
        %897 = vmatprep.subr.mxu0 0.0
        %898 = vmatpush1.msra.mxu0 0.0
        %899 = vmatprep.subr.mxu0 0.0
        %900 = vmatpush1.msra.mxu0 0.0
        %901 = vmatprep.subr.mxu0 0.0
        %902 = vmatpush1.msra.mxu0 0.0
        %903 = vmatprep.subr.mxu0 0.0
        %904 = vmatpush1.msra.mxu0 0.0
        %905 = vmatprep.subr.mxu0 0.0
        %906 = vmatpush1.msra.mxu0 0.0
        %907 = vmatprep.subr.mxu0 0.0
        %908 = vmatpush1.msra.mxu0 0.0
        %909 = vmatprep.subr.mxu0 0.0
        %910 = vmatpush1.msra.mxu0 0.0
        %911 = vmatprep.subr.mxu0 0.0
        %912 = vmatpush1.msra.mxu0 0.0
        %913 = vmatprep.subr.mxu0 0.0
        %914 = vmatpush1.msra.mxu0 %v892
        %915 = vmatprep.subr.mxu0 0.0
        %916 = vmatpush1.msra.mxu0 %v891
        %917 = vmatprep.subr.mxu0 0.0
        %918 = vmatpush1.msra.mxu0 %v890
        %919 = vmatprep.subr.mxu0 0.0
        %920 = vmatpush1.msra.mxu0 %v889
        %921 = vmatprep.subr.mxu0 0.0
        %922 = vmatpush1.msra.mxu0 %v888
        %923 = vmatprep.subr.mxu0 0.0
        %924 = vmatpush1.msra.mxu0 %v887
        %925 = vmatprep.subr.mxu0 0.0
        %926 = vmatpush1.msra.mxu0 %v886
        %927 = vmatprep.subr.mxu0 0.0
        %928 = vmatpush1.msra.mxu0 %v885
        %929 = vmatprep.subr.mxu0 0.0
        %930 = vmatpush2.msra.mxu0 0.0
        %931 = vmatprep.subr.mxu0 0.0
        %932 = vmatpush2.msra.mxu0 0.0
        %933 = vmatprep.subr.mxu0 0.0
        %934 = vmatpush2.msra.mxu0 0.0
        %935 = vmatprep.subr.mxu0 0.0
        %936 = vmatpush2.msra.mxu0 0.0
        %937 = vmatprep.subr.mxu0 0.0
        %938 = vmatpush2.msra.mxu0 0.0
        %939 = vmatprep.subr.mxu0 0.0
        %940 = vmatpush2.msra.mxu0 0.0
        %941 = vmatprep.subr.mxu0 0.0
        %942 = vmatpush2.msra.mxu0 0.0
        %943 = vmatprep.subr.mxu0 0.0
        %944 = vmatpush2.msra.mxu0 0.0
        %945 = vmatprep.subr.mxu0 0.0
        %946 = vmatpush2.msra.mxu0 0.0
        %947 = vmatprep.subr.mxu0 0.0
        %948 = vmatpush2.msra.mxu0 0.0
        %949 = vmatprep.subr.mxu0 0.0
        %950 = vmatpush2.msra.mxu0 0.0
        %951 = vmatprep.subr.mxu0 0.0
        %952 = vmatpush2.msra.mxu0 0.0
        %953 = vmatprep.subr.mxu0 0.0
        %954 = vmatpush2.msra.mxu0 0.0
        %955 = vmatprep.subr.mxu0 0.0
        %956 = vmatpush2.msra.mxu0 0.0
        %957 = vmatprep.subr.mxu0 0.0
        %958 = vmatpush2.msra.mxu0 0.0
        %959 = vmatprep.subr.mxu0 0.0
        %960 = vmatpush2.msra.mxu0 0.0
        %961 = vmatprep.mubr.f32.mxu0 0.0
        %962 = vmatmul.mubr.f32.gmra.mxu0 %v895
        %v963 = vpop.f32.mrf.mxu0
        %v964 = vadd.f32 %v893, %v963
        %v965 = vpop.f32.mrf.mxu0
        %966 = vdwg.mxu0
        %v967 = vmax.f32 %v964, 0.0
        %v968 = vld [vmem:[%s11] sm:$0xff]
        %v969 = vld [vmem:[%s11 + $0x8] sm:$0xff]
        %v970 = vld [vmem:[%s11 + $0x10] sm:$0xff]
        %v971 = vld [vmem:[%s11 + $0x18] sm:$0xff]
        %v972 = vld [vmem:[%s12] sm:$0x1]
        %v974 = vsel %vm567, %v967, 0
        %976 = vmatprep.subr.mxu0 0.0
        %977 = vmatpush1.msra.mxu0 0.0
        %978 = vmatprep.subr.mxu0 0.0
        %979 = vmatpush1.msra.mxu0 0.0
        %980 = vmatprep.subr.mxu0 0.0
        %981 = vmatpush1.msra.mxu0 0.0
        %982 = vmatprep.subr.mxu0 0.0
        %983 = vmatpush1.msra.mxu0 0.0
        %984 = vmatprep.subr.mxu0 0.0
        %985 = vmatpush1.msra.mxu0 0.0
        %986 = vmatprep.subr.mxu0 0.0
        %987 = vmatpush1.msra.mxu0 0.0
        %988 = vmatprep.subr.mxu0 0.0
        %989 = vmatpush1.msra.mxu0 0.0
        %990 = vmatprep.subr.mxu0 0.0
        %991 = vmatpush1.msra.mxu0 0.0
        %992 = vmatprep.subr.mxu0 0.0
        %993 = vmatpush1.msra.mxu0 0.0
        %994 = vmatprep.subr.mxu0 0.0
        %995 = vmatpush1.msra.mxu0 0.0
        %996 = vmatprep.subr.mxu0 0.0
        %997 = vmatpush1.msra.mxu0 0.0
        %998 = vmatprep.subr.mxu0 0.0
        %999 = vmatpush1.msra.mxu0 0.0
        %1000 = vmatprep.subr.mxu0 0.0
        %1001 = vmatpush1.msra.mxu0 %v971
        %1002 = vmatprep.subr.mxu0 0.0
        %1003 = vmatpush1.msra.mxu0 %v970
        %1004 = vmatprep.subr.mxu0 0.0
        %1005 = vmatpush1.msra.mxu0 %v969
        %1006 = vmatprep.subr.mxu0 0.0
        %1007 = vmatpush1.msra.mxu0 %v968
        %1008 = vmatprep.subr.mxu0 0.0
        %1009 = vmatpush2.msra.mxu0 0.0
        %1010 = vmatprep.subr.mxu0 0.0
        %1011 = vmatpush2.msra.mxu0 0.0
        %1012 = vmatprep.subr.mxu0 0.0
        %1013 = vmatpush2.msra.mxu0 0.0
        %1014 = vmatprep.subr.mxu0 0.0
        %1015 = vmatpush2.msra.mxu0 0.0
        %1016 = vmatprep.subr.mxu0 0.0
        %1017 = vmatpush2.msra.mxu0 0.0
        %1018 = vmatprep.subr.mxu0 0.0
        %1019 = vmatpush2.msra.mxu0 0.0
        %1020 = vmatprep.subr.mxu0 0.0
        %1021 = vmatpush2.msra.mxu0 0.0
        %1022 = vmatprep.subr.mxu0 0.0
        %1023 = vmatpush2.msra.mxu0 0.0
        %1024 = vmatprep.subr.mxu0 0.0
        %1025 = vmatpush2.msra.mxu0 0.0
        %1026 = vmatprep.subr.mxu0 0.0
        %1027 = vmatpush2.msra.mxu0 0.0
        %1028 = vmatprep.subr.mxu0 0.0
        %1029 = vmatpush2.msra.mxu0 0.0
        %1030 = vmatprep.subr.mxu0 0.0
        %1031 = vmatpush2.msra.mxu0 0.0
        %1032 = vmatprep.subr.mxu0 0.0
        %1033 = vmatpush2.msra.mxu0 0.0
        %1034 = vmatprep.subr.mxu0 0.0
        %1035 = vmatpush2.msra.mxu0 0.0
        %1036 = vmatprep.subr.mxu0 0.0
        %1037 = vmatpush2.msra.mxu0 0.0
        %1038 = vmatprep.subr.mxu0 0.0
        %1039 = vmatpush2.msra.mxu0 0.0
        %1040 = vmatprep.mubr.f32.mxu0 0.0
        %1041 = vmatmul.mubr.f32.gmra.mxu0 %v974
        %v1042 = vpop.f32.mrf.mxu0
        %v1043 = vadd.f32 %v972, %v1042
        %v1044 = vpop.f32.mrf.mxu0
        %1045 = vdwg.mxu0
        %v1046 = vlaneseq
        %v1047 = vand.u32 %v1046, 127
        %vm1048 = vcmp.eq.s32.totalorder %v1047, 0
        %vm1049 = vcmp.eq.s32.totalorder %v1047, 3
        %vm1050 = vmor %vm1048, %vm1049
        %v1051 = vsel %vm1050, 1.0, 0.0
        %v1052 = vadd.f32 %v1043, %v1051
        %1053 = vst [vmem:[%s432] sm:$0x1] %v1052
        %s1054 = sand.u32 %s313, 1
        %s1055 = scalar_lea.sflag [#allocation3], %s1054
        %s1056 = sand.u32 %s313, 1
        %s1057 = scalar_lea.vmem [#allocation2], %s1056
        // Predicated region
        $region73: #{tpu_custom_call.1} parent=71 // pred_check
          %p1058 = pneg %p323
        $region74: #{tpu_custom_call.1} parent=71 // pred_check_branch
          %1060 = sbr.rel (%p1058) target = $region76
        $region75: #{tpu_custom_call.1} parent=71 // pred_region
          %s1062 = ssub.s32 16, 16
          %1063 = vsyncadd %s1055, %s1062
          %s1064 = smul.addr %s27, 16
          %s1065 = scalar_lea.hbm %s13, %s1064
          %s1067 = sshll.u32 %s1057, 4
          %s1068 = int_to_ptr.vmem [resolvable:$true] %s1067
          %1070 = dma.vmem_to_hbm [thread:$0]  %s1068, 16, %s1065, %s1055
        $region76: #{tpu_custom_call.1} parent=71 // pred_fallthru
          _
      $region72: #{tpu_custom_call.1} parent=5 // pred_fallthru
        _
      %p1071 = scmp.le.s32.totalorder 2, %s22
      // Predicated region
      $region77: #{tpu_custom_call.1} parent=5 // pred_check
        %p1072 = pneg %p1071
      $region78: #{tpu_custom_call.1} parent=5 // pred_check_branch
        %1074 = sbr.rel (%p1072) target = $region80
      $region79: #{tpu_custom_call.1} parent=5 // pred_region
        %s1075 = ssub.s32 %s22, 2
        // Predicated region
        $region81: #{tpu_custom_call.1} parent=79 // pred_check
          %p1076 = pneg %p329
        $region82: #{tpu_custom_call.1} parent=79 // pred_check_branch
          %1078 = sbr.rel (%p1076) target = $region84
        $region83: #{tpu_custom_call.1} parent=79 // pred_region
          %s1079 = sand.u32 %s314, 1
          %s1080 = scalar_lea.sflag [#allocation3], %s1079
          %s1081 = sand.u32 %s314, 1
          %s1082 = scalar_lea.vmem [#allocation2], %s1081
          %1083 = dma.done %s1080, 16
        $region84: #{tpu_custom_call.1} parent=79 // pred_fallthru
          _
      $region80: #{tpu_custom_call.1} parent=5 // pred_fallthru
        _
    $region6: #{tpu_custom_call.1} parent=1 // loop_footer
      %s26 = sadd.s32 1, %s22
    $region7: #{tpu_custom_call.1} parent=1 // loop_footer_branch
      %21 = sbr.rel target = $region3
    $region8: #{tpu_custom_call.1} parent=1 // loop_exit
      _
    %1084 = vsyncpa [#allocation3], 1
    %s1085 = scalar_lea.sflag [#allocation3], 1
    %1086 = vsyncpa %s1085, 1

</llo_original>
